<compile_context>
chip_gen: v7x
topology: tpu7x:2x2x1
jax: 0.10.0
libtpu: 0.0.40
codegen_flags: <defaults>
</compile_context>

<pallas_src>
import jax
import jax.numpy as jnp
from jax import lax
from jax.experimental import pallas as pl
from jax.experimental.pallas import tpu as pltpu


def _round_up(x, m):
    return (x + m - 1) // m * m


def _pick_tile(padded, cap_candidates):
    """Largest candidate (<= padded) that divides the padded extent."""
    if padded <= cap_candidates[0]:
        return padded
    return next(c for c in cap_candidates if padded % c == 0)


def _relu_linear_kernel(x_ref, w_ref, o_ref):
    """o[b, n] = sum_k relu(x)[b, k] * w[n, k], accumulated over the K axis.

    The output BlockSpec ignores the K grid index, so o_ref stays resident in
    VMEM across all K steps; the output is f32, so we accumulate into it
    directly (no scratch accumulator, no final cast/copy).
    """
    x = jnp.maximum(x_ref[...], 0.0)  # fused ReLU (inplace in the torch ref)
    partial = lax.dot_general(
        x, w_ref[...],
        dimension_numbers=(((1,), (1,)), ((), ())),  # contract K of x with K of w[N, K]
        preferred_element_type=jnp.float32)

    k = pl.program_id(2)

    @pl.when(k == 0)
    def _():
        o_ref[...] = partial

    @pl.when(k > 0)
    def _():
        o_ref[...] += partial


@jax.jit
def head_forward(x_nchw, w_linear):
    """Forward pass of Head.

    x_nchw:   [B, C, H, W]  (NCHW, float32)
    w_linear: [out_features, in_features]  (PyTorch nn.Linear weight layout)
    returns:  [B, out_features]  (after squeeze(dim=1))
    """
    B = x_nchw.shape[0]
    K = x_nchw.shape[1] * x_nchw.shape[2] * x_nchw.shape[3]
    N, K_w = w_linear.shape
    assert K_w == K, (K_w, K)

    # Backbone (glue): flatten NCHW -> [B, in_features].
    x2d = x_nchw.reshape(B, K).astype(jnp.float32)

    # ---- pad toward (8, 128) sublane/lane density --------------------------
    B_pad = _round_up(max(B, 8), 8)     # sublane density for LHS / output rows
    N_pad = _round_up(N, 128)           # lane-dense output: unmasked stores
    K_pad = _round_up(K, 128)           # lane-aligned reduction dim

    # ---- tile selection -----------------------------------------------------
    # Single step per axis whenever the padded extent fits the cap; otherwise
    # the largest aligned divisor.  Worst-case double-buffered VMEM:
    #   x: 2*256*2048*4 = 4 MiB, w: 2*512*2048*4 = 8 MiB, out: 2*256*512*4 = 1 MiB
    # -> ~13 MiB, under the default scoped-VMEM limit on v5e/v6e/v7x.
    tb = _pick_tile(B_pad, (256, 128, 64, 32, 16, 8))
    tn = _pick_tile(N_pad, (512, 256, 128))
    tk = _pick_tile(K_pad, (2048, 1024, 512, 256, 128))

    # ---- zero-pad operands (relu(0) = 0, so padded K columns contribute 0) --
    if (B_pad, K_pad) != (B, K):
        x2d = jnp.pad(x2d, ((0, B_pad - B), (0, K_pad - K)))
    w2d = w_linear.astype(jnp.float32)
    if (N_pad, K_pad) != (N, K):
        w2d = jnp.pad(w2d, ((0, N_pad - N), (0, K_pad - K)))

    grid = (B_pad // tb, N_pad // tn, K_pad // tk)  # (parallel B, parallel N, reduce K)

    out = pl.pallas_call(
        _relu_linear_kernel,
        out_shape=jax.ShapeDtypeStruct((B_pad, N_pad), jnp.float32),
        grid_spec=pltpu.PrefetchScalarGridSpec(
            num_scalar_prefetch=0,
            grid=grid,
            in_specs=[
                pl.BlockSpec((tb, tk), lambda b, n, k: (b, k)),   # relu input
                pl.BlockSpec((tn, tk), lambda b, n, k: (n, k)),   # weight [N, K]
            ],
            out_specs=pl.BlockSpec((tb, tn), lambda b, n, k: (b, n)),
        ),
        compiler_params=pltpu.CompilerParams(
            dimension_semantics=("parallel", "parallel", "arbitrary"),
        ),
    )(x2d, w2d)

    # Linear output is conceptually [B, 1, out_features]; squeeze(dim=1).
    return out[:B, :N]


def head_reference(x_nchw, w_linear):
    """Pure-JAX reference matching the PyTorch forward."""
    B = x_nchw.shape[0]
    feat = x_nchw.reshape(B, 1, -1)
    y = jnp.maximum(feat, 0.0) @ w_linear.T
    return jnp.squeeze(y, 1)


if __name__ == "__main__":
    key = jax.random.PRNGKey(0)
    kx, kw = jax.random.split(key)

    B, C, H, W = 2, 4, 16, 16
    in_features = C * H * W          # 1024
    out_features = 32

    x = jax.random.normal(kx, (B, C, H, W), dtype=jnp.float32)
    # Deterministic bias-free Linear weight, PyTorch layout [out, in].
    w = (jax.random.normal(kw, (out_features, in_features), dtype=jnp.float32)
         * (1.0 / jnp.sqrt(in_features)))

    y = head_forward(x, w)
    jax.block_until_ready(y)

    y_ref = head_reference(x, w)
    assert y.shape == (B, out_features), y.shape
    assert jnp.allclose(y, y_ref, atol=1e-4, rtol=1e-4), float(
        jnp.max(jnp.abs(y - y_ref))
    )

    print("KERNEL_OK")
</pallas_src>

<mosaic_0001>
module attributes {stable_mosaic.version = 11 : i64} {
  func.func @_relu_linear_kernel(%arg0: i32, %arg1: i32, %arg2: i32, %arg3: memref<8x1024xf32, #tpu.memory_space<vmem>>, %arg4: memref<128x1024xf32, #tpu.memory_space<vmem>>, %arg5: memref<8x128xf32, #tpu.memory_space<vmem>>) attributes {dimension_semantics = [#tpu.dimension_semantics<parallel>, #tpu.dimension_semantics<parallel>, #tpu.dimension_semantics<arbitrary>], iteration_bounds = array<i64: 1, 1, 1>, scalar_prefetch = 0 : i64, scratch_operands = 0 : i64, tpu.core_type = #tpu.core_type<tc>, window_params = [{transform_indices = @transform_0, window_bounds = array<i64: 8, 1024>}, {transform_indices = @transform_1, window_bounds = array<i64: 128, 1024>}, {transform_indices = @transform_2, window_bounds = array<i64: 8, 128>}]} {
    %c0 = arith.constant 0 : index
    %c0_0 = arith.constant 0 : index
    %0 = vector.load %arg3[%c0, %c0_0] : memref<8x1024xf32, #tpu.memory_space<vmem>>, vector<8x1024xf32>
    %cst = arith.constant 0.000000e+00 : f32
    %1 = vector.broadcast %cst : f32 to vector<8x1024xf32>
    %2 = arith.maximumf %0, %1 : vector<8x1024xf32>
    %c0_1 = arith.constant 0 : index
    %c0_2 = arith.constant 0 : index
    %3 = vector.load %arg4[%c0_1, %c0_2] : memref<128x1024xf32, #tpu.memory_space<vmem>>, vector<128x1024xf32>
    %cst_3 = arith.constant dense<0.000000e+00> : vector<8x128xf32>
    %4 = tpu.matmul %2, %3, %cst_3 {dimension_numbers = #tpu.dot_dimension_numbers<[1], [1], [0], [0], [0, 0, 1, 0], [], []>} : vector<8x1024xf32>, vector<128x1024xf32>, vector<8x128xf32> -> vector<8x128xf32>
    %c0_i32 = arith.constant 0 : i32
    %5 = arith.cmpi eq, %arg2, %c0_i32 : i32
    %6 = arith.extui %5 : i1 to i32
    %c0_i32_4 = arith.constant 0 : i32
    %7 = arith.cmpi ne, %6, %c0_i32_4 : i32
    scf.if %7 {
      %c0_7 = arith.constant 0 : index
      %c0_8 = arith.constant 0 : index
      %11 = vector.load %arg5[%c0_7, %c0_8] : memref<8x128xf32, #tpu.memory_space<vmem>>, vector<8x128xf32>
      tpu.vector_store %arg5[%c0_7, %c0_8], %4 {strides = array<i32>} : memref<8x128xf32, #tpu.memory_space<vmem>>, vector<8x128xf32>,
    } else {
    }
    %c0_i32_5 = arith.constant 0 : i32
    %8 = arith.cmpi sgt, %arg2, %c0_i32_5 : i32
    %9 = arith.extui %8 : i1 to i32
    %c0_i32_6 = arith.constant 0 : i32
    %10 = arith.cmpi ne, %9, %c0_i32_6 : i32
    scf.if %10 {
      %c0_7 = arith.constant 0 : index
      %c0_8 = arith.constant 0 : index
      %11 = vector.load %arg5[%c0_7, %c0_8] : memref<8x128xf32, #tpu.memory_space<vmem>>, vector<8x128xf32>
      %12 = arith.addf %11, %4 : vector<8x128xf32>
      %c0_9 = arith.constant 0 : index
      %c0_10 = arith.constant 0 : index
      %13 = vector.load %arg5[%c0_9, %c0_10] : memref<8x128xf32, #tpu.memory_space<vmem>>, vector<8x128xf32>
      tpu.vector_store %arg5[%c0_9, %c0_10], %12 {strides = array<i32>} : memref<8x128xf32, #tpu.memory_space<vmem>>, vector<8x128xf32>,
    } else {
    }
    return
  }
  func.func @transform_0(%arg0: i32, %arg1: i32, %arg2: i32) -> (i32, i32) {
    %c0_i32 = arith.constant 0 : i32
    return %arg0, %arg2 : i32, i32
  }
  func.func @transform_1(%arg0: i32, %arg1: i32, %arg2: i32) -> (i32, i32) {
    %c0_i32 = arith.constant 0 : i32
    return %arg1, %arg2 : i32, i32
  }
  func.func @transform_2(%arg0: i32, %arg1: i32, %arg2: i32) -> (i32, i32) {
    %c0_i32 = arith.constant 0 : i32
    return %arg0, %arg1 : i32, i32
  }
}

</mosaic_0001>

<llo_original>
// kernel: head_forward.1
$region0: #{head_forward.1}
  #allocation0 [shape = 'u32[]', space=smem, size = 0x4, offset = 0x4, fixed_abs, tag = 'smem constant byte address 0x4 - core index']
  #allocation1 [shape = 'u32[144,128]{1,0:T(1,128)}', space=vmem, size = 0x12000, scoped, tag = 'internal scratch']
  %s0 = inlined_call_operand.vmem [shape: f32[8,1024], index: 0, kind: input, shape index: {}]
  %s1 = inlined_call_operand.vmem [shape: f32[128,1024], index: 1, kind: input, shape index: {}]
  %s2 = inlined_call_operand.vmem [shape: f32[8,128], index: 2, kind: output, shape index: {}]
  %s3 = sld [smem:[#allocation0]]
  $region26: #{head_forward.1} parent=0
    _
  %s5 = ssub.s32 1, %s3
  %s6 = scalar_select 0, %s5, %s3
  // Predicated region
  $region2: #{head_forward.1} parent=0 // pred_check
    _
  $region3: #{head_forward.1} parent=0 // pred_check_branch
    %8 = sbr.rel (0) target = $region5
  $region4: #{head_forward.1} parent=0 // pred_region
    _
  $region5: #{head_forward.1} parent=0 // pred_fallthru
    _
  // Predicated region
  $region6: #{head_forward.1} parent=0 // pred_check
    _
  $region7: #{head_forward.1} parent=0 // pred_check_branch
    %10 = sbr.rel (0) target = $region9
  $region8: #{head_forward.1} parent=0 // pred_region
    _
  $region9: #{head_forward.1} parent=0 // pred_fallthru
    _
  %v11 = vld [vmem:[%s0] sm:$0xff]
  %v12 = vld [vmem:[%s0 + $0x8] sm:$0xff]
  %v13 = vld [vmem:[%s0 + $0x10] sm:$0xff]
  %v14 = vld [vmem:[%s0 + $0x18] sm:$0xff]
  %v15 = vld [vmem:[%s0 + $0x20] sm:$0xff]
  %v16 = vld [vmem:[%s0 + $0x28] sm:$0xff]
  %v17 = vld [vmem:[%s0 + $0x30] sm:$0xff]
  %v18 = vld [vmem:[%s0 + $0x38] sm:$0xff]
  %v19 = vmax.f32 %v11, 0.0
  %v20 = vmax.f32 %v12, 0.0
  %v21 = vmax.f32 %v13, 0.0
  %v22 = vmax.f32 %v14, 0.0
  %v23 = vmax.f32 %v15, 0.0
  %v24 = vmax.f32 %v16, 0.0
  %v25 = vmax.f32 %v17, 0.0
  %v26 = vmax.f32 %v18, 0.0
  %v27 = vld [vmem:[%s1] sm:$0xff]
  %v28 = vld [vmem:[%s1 + $0x8] sm:$0xff]
  %v29 = vld [vmem:[%s1 + $0x10] sm:$0xff]
  %v30 = vld [vmem:[%s1 + $0x18] sm:$0xff]
  %v31 = vld [vmem:[%s1 + $0x20] sm:$0xff]
  %v32 = vld [vmem:[%s1 + $0x28] sm:$0xff]
  %v33 = vld [vmem:[%s1 + $0x30] sm:$0xff]
  %v34 = vld [vmem:[%s1 + $0x38] sm:$0xff]
  %v35 = vld [vmem:[%s1 + $0x40] sm:$0xff]
  %v36 = vld [vmem:[%s1 + $0x48] sm:$0xff]
  %v37 = vld [vmem:[%s1 + $0x50] sm:$0xff]
  %v38 = vld [vmem:[%s1 + $0x58] sm:$0xff]
  %v39 = vld [vmem:[%s1 + $0x60] sm:$0xff]
  %v40 = vld [vmem:[%s1 + $0x68] sm:$0xff]
  %v41 = vld [vmem:[%s1 + $0x70] sm:$0xff]
  %v42 = vld [vmem:[%s1 + $0x78] sm:$0xff]
  %v43 = vld [vmem:[%s1 + $0x80] sm:$0xff]
  %v44 = vld [vmem:[%s1 + $0x88] sm:$0xff]
  %v45 = vld [vmem:[%s1 + $0x90] sm:$0xff]
  %v46 = vld [vmem:[%s1 + $0x98] sm:$0xff]
  %v47 = vld [vmem:[%s1 + $0xa0] sm:$0xff]
  %v48 = vld [vmem:[%s1 + $0xa8] sm:$0xff]
  %v49 = vld [vmem:[%s1 + $0xb0] sm:$0xff]
  %v50 = vld [vmem:[%s1 + $0xb8] sm:$0xff]
  %v51 = vld [vmem:[%s1 + $0xc0] sm:$0xff]
  %v52 = vld [vmem:[%s1 + $0xc8] sm:$0xff]
  %v53 = vld [vmem:[%s1 + $0xd0] sm:$0xff]
  %v54 = vld [vmem:[%s1 + $0xd8] sm:$0xff]
  %v55 = vld [vmem:[%s1 + $0xe0] sm:$0xff]
  %v56 = vld [vmem:[%s1 + $0xe8] sm:$0xff]
  %v57 = vld [vmem:[%s1 + $0xf0] sm:$0xff]
  %v58 = vld [vmem:[%s1 + $0xf8] sm:$0xff]
  %v59 = vld [vmem:[%s1 + $0x100] sm:$0xff]
  %v60 = vld [vmem:[%s1 + $0x108] sm:$0xff]
  %v61 = vld [vmem:[%s1 + $0x110] sm:$0xff]
  %v62 = vld [vmem:[%s1 + $0x118] sm:$0xff]
  %v63 = vld [vmem:[%s1 + $0x120] sm:$0xff]
  %v64 = vld [vmem:[%s1 + $0x128] sm:$0xff]
  %v65 = vld [vmem:[%s1 + $0x130] sm:$0xff]
  %v66 = vld [vmem:[%s1 + $0x138] sm:$0xff]
  %v67 = vld [vmem:[%s1 + $0x140] sm:$0xff]
  %v68 = vld [vmem:[%s1 + $0x148] sm:$0xff]
  %v69 = vld [vmem:[%s1 + $0x150] sm:$0xff]
  %v70 = vld [vmem:[%s1 + $0x158] sm:$0xff]
  %v71 = vld [vmem:[%s1 + $0x160] sm:$0xff]
  %v72 = vld [vmem:[%s1 + $0x168] sm:$0xff]
  %v73 = vld [vmem:[%s1 + $0x170] sm:$0xff]
  %v74 = vld [vmem:[%s1 + $0x178] sm:$0xff]
  %v75 = vld [vmem:[%s1 + $0x180] sm:$0xff]
  %v76 = vld [vmem:[%s1 + $0x188] sm:$0xff]
  %v77 = vld [vmem:[%s1 + $0x190] sm:$0xff]
  %v78 = vld [vmem:[%s1 + $0x198] sm:$0xff]
  %v79 = vld [vmem:[%s1 + $0x1a0] sm:$0xff]
  %v80 = vld [vmem:[%s1 + $0x1a8] sm:$0xff]
  %v81 = vld [vmem:[%s1 + $0x1b0] sm:$0xff]
  %v82 = vld [vmem:[%s1 + $0x1b8] sm:$0xff]
  %v83 = vld [vmem:[%s1 + $0x1c0] sm:$0xff]
  %v84 = vld [vmem:[%s1 + $0x1c8] sm:$0xff]
  %v85 = vld [vmem:[%s1 + $0x1d0] sm:$0xff]
  %v86 = vld [vmem:[%s1 + $0x1d8] sm:$0xff]
  %v87 = vld [vmem:[%s1 + $0x1e0] sm:$0xff]
  %v88 = vld [vmem:[%s1 + $0x1e8] sm:$0xff]
  %v89 = vld [vmem:[%s1 + $0x1f0] sm:$0xff]
  %v90 = vld [vmem:[%s1 + $0x1f8] sm:$0xff]
  %v91 = vld [vmem:[%s1 + $0x200] sm:$0xff]
  %v92 = vld [vmem:[%s1 + $0x208] sm:$0xff]
  %v93 = vld [vmem:[%s1 + $0x210] sm:$0xff]
  %v94 = vld [vmem:[%s1 + $0x218] sm:$0xff]
  %v95 = vld [vmem:[%s1 + $0x220] sm:$0xff]
  %v96 = vld [vmem:[%s1 + $0x228] sm:$0xff]
  %v97 = vld [vmem:[%s1 + $0x230] sm:$0xff]
  %v98 = vld [vmem:[%s1 + $0x238] sm:$0xff]
  %v99 = vld [vmem:[%s1 + $0x240] sm:$0xff]
  %v100 = vld [vmem:[%s1 + $0x248] sm:$0xff]
  %v101 = vld [vmem:[%s1 + $0x250] sm:$0xff]
  %v102 = vld [vmem:[%s1 + $0x258] sm:$0xff]
  %v103 = vld [vmem:[%s1 + $0x260] sm:$0xff]
  %v104 = vld [vmem:[%s1 + $0x268] sm:$0xff]
  %v105 = vld [vmem:[%s1 + $0x270] sm:$0xff]
  %v106 = vld [vmem:[%s1 + $0x278] sm:$0xff]
  %v107 = vld [vmem:[%s1 + $0x280] sm:$0xff]
  %v108 = vld [vmem:[%s1 + $0x288] sm:$0xff]
  %v109 = vld [vmem:[%s1 + $0x290] sm:$0xff]
  %v110 = vld [vmem:[%s1 + $0x298] sm:$0xff]
  %v111 = vld [vmem:[%s1 + $0x2a0] sm:$0xff]
  %v112 = vld [vmem:[%s1 + $0x2a8] sm:$0xff]
  %v113 = vld [vmem:[%s1 + $0x2b0] sm:$0xff]
  %v114 = vld [vmem:[%s1 + $0x2b8] sm:$0xff]
  %v115 = vld [vmem:[%s1 + $0x2c0] sm:$0xff]
  %v116 = vld [vmem:[%s1 + $0x2c8] sm:$0xff]
  %v117 = vld [vmem:[%s1 + $0x2d0] sm:$0xff]
  %v118 = vld [vmem:[%s1 + $0x2d8] sm:$0xff]
  %v119 = vld [vmem:[%s1 + $0x2e0] sm:$0xff]
  %v120 = vld [vmem:[%s1 + $0x2e8] sm:$0xff]
  %v121 = vld [vmem:[%s1 + $0x2f0] sm:$0xff]
  %v122 = vld [vmem:[%s1 + $0x2f8] sm:$0xff]
  %v123 = vld [vmem:[%s1 + $0x300] sm:$0xff]
  %v124 = vld [vmem:[%s1 + $0x308] sm:$0xff]
  %v125 = vld [vmem:[%s1 + $0x310] sm:$0xff]
  %v126 = vld [vmem:[%s1 + $0x318] sm:$0xff]
  %v127 = vld [vmem:[%s1 + $0x320] sm:$0xff]
  %v128 = vld [vmem:[%s1 + $0x328] sm:$0xff]
  %v129 = vld [vmem:[%s1 + $0x330] sm:$0xff]
  %v130 = vld [vmem:[%s1 + $0x338] sm:$0xff]
  %v131 = vld [vmem:[%s1 + $0x340] sm:$0xff]
  %v132 = vld [vmem:[%s1 + $0x348] sm:$0xff]
  %v133 = vld [vmem:[%s1 + $0x350] sm:$0xff]
  %v134 = vld [vmem:[%s1 + $0x358] sm:$0xff]
  %v135 = vld [vmem:[%s1 + $0x360] sm:$0xff]
  %v136 = vld [vmem:[%s1 + $0x368] sm:$0xff]
  %v137 = vld [vmem:[%s1 + $0x370] sm:$0xff]
  %v138 = vld [vmem:[%s1 + $0x378] sm:$0xff]
  %v139 = vld [vmem:[%s1 + $0x380] sm:$0xff]
  %v140 = vld [vmem:[%s1 + $0x388] sm:$0xff]
  %v141 = vld [vmem:[%s1 + $0x390] sm:$0xff]
  %v142 = vld [vmem:[%s1 + $0x398] sm:$0xff]
  %v143 = vld [vmem:[%s1 + $0x3a0] sm:$0xff]
  %v144 = vld [vmem:[%s1 + $0x3a8] sm:$0xff]
  %v145 = vld [vmem:[%s1 + $0x3b0] sm:$0xff]
  %v146 = vld [vmem:[%s1 + $0x3b8] sm:$0xff]
  %v147 = vld [vmem:[%s1 + $0x3c0] sm:$0xff]
  %v148 = vld [vmem:[%s1 + $0x3c8] sm:$0xff]
  %v149 = vld [vmem:[%s1 + $0x3d0] sm:$0xff]
  %v150 = vld [vmem:[%s1 + $0x3d8] sm:$0xff]
  %v151 = vld [vmem:[%s1 + $0x3e0] sm:$0xff]
  %v152 = vld [vmem:[%s1 + $0x3e8] sm:$0xff]
  %v153 = vld [vmem:[%s1 + $0x3f0] sm:$0xff]
  %v154 = vld [vmem:[%s1 + $0x3f8] sm:$0xff]
  %155 = vmatprep.subr.mxu0 %v28
  %156 = vmatpush1.xpose.msra.mxu0 %v27
  %157 = vmatprep.subr.mxu0 %v36
  %158 = vmatpush1.xpose.msra.mxu0 %v35
  %159 = vmatprep.subr.mxu0 %v44
  %160 = vmatpush1.xpose.msra.mxu0 %v43
  %161 = vmatprep.subr.mxu0 %v52
  %162 = vmatpush1.xpose.msra.mxu0 %v51
  %163 = vmatprep.subr.mxu0 %v60
  %164 = vmatpush1.xpose.msra.mxu0 %v59
  %165 = vmatprep.subr.mxu0 %v68
  %166 = vmatpush1.xpose.msra.mxu0 %v67
  %167 = vmatprep.subr.mxu0 %v76
  %168 = vmatpush1.xpose.msra.mxu0 %v75
  %169 = vmatprep.subr.mxu0 %v84
  %170 = vmatpush1.xpose.msra.mxu0 %v83
  %171 = vmatprep.subr.mxu0 %v92
  %172 = vmatpush1.xpose.msra.mxu0 %v91
  %173 = vmatprep.subr.mxu0 %v100
  %174 = vmatpush1.xpose.msra.mxu0 %v99
  %175 = vmatprep.subr.mxu0 %v108
  %176 = vmatpush1.xpose.msra.mxu0 %v107
  %177 = vmatprep.subr.mxu0 %v116
  %178 = vmatpush1.xpose.msra.mxu0 %v115
  %179 = vmatprep.subr.mxu0 %v124
  %180 = vmatpush1.xpose.msra.mxu0 %v123
  %181 = vmatprep.subr.mxu0 %v132
  %182 = vmatpush1.xpose.msra.mxu0 %v131
  %183 = vmatprep.subr.mxu0 %v140
  %184 = vmatpush1.xpose.msra.mxu0 %v139
  %185 = vmatprep.subr.mxu0 %v148
  %186 = vmatpush1.xpose.msra.mxu0 %v147
  %187 = vmatprep.subr.mxu0 0.0
  %188 = vmatpush1.xpose.msra.mxu0 0.0
  %189 = vmatprep.subr.mxu0 0.0
  %190 = vmatpush1.xpose.msra.mxu0 0.0
  %191 = vmatprep.subr.mxu0 0.0
  %192 = vmatpush1.xpose.msra.mxu0 0.0
  %193 = vmatprep.subr.mxu0 0.0
  %194 = vmatpush1.xpose.msra.mxu0 0.0
  %195 = vmatprep.subr.mxu0 0.0
  %196 = vmatpush1.xpose.msra.mxu0 0.0
  %197 = vmatprep.subr.mxu0 0.0
  %198 = vmatpush1.xpose.msra.mxu0 0.0
  %199 = vmatprep.subr.mxu0 0.0
  %200 = vmatpush1.xpose.msra.mxu0 0.0
  %201 = vmatprep.subr.mxu0 0.0
  %202 = vmatpush1.xpose.msra.mxu0 0.0
  %203 = vmatprep.subr.mxu0 0.0
  %204 = vmatpush1.xpose.msra.mxu0 0.0
  %205 = vmatprep.subr.mxu0 0.0
  %206 = vmatpush1.xpose.msra.mxu0 0.0
  %207 = vmatprep.subr.mxu0 0.0
  %208 = vmatpush1.xpose.msra.mxu0 0.0
  %209 = vmatprep.subr.mxu0 0.0
  %210 = vmatpush1.xpose.msra.mxu0 0.0
  %211 = vmatprep.subr.mxu0 0.0
  %212 = vmatpush1.xpose.msra.mxu0 0.0
  %213 = vmatprep.subr.mxu0 0.0
  %214 = vmatpush1.xpose.msra.mxu0 0.0
  %215 = vmatprep.subr.mxu0 0.0
  %216 = vmatpush1.xpose.msra.mxu0 0.0
  %217 = vmatprep.subr.mxu0 0.0
  %218 = vmatpush1.xpose.msra.mxu0 0.0
  %219 = vmatprep.mubr.f32.mxu0 %v20
  %220 = vmatmul.mubr.f32.gmra.mrb[0].mxu0 %v19
  %v221 = vpop.f32.mrb[0].mxu0
  %v222 = vadd.f32 0.0, %v221
  %v223 = vpop.f32.mrb[0].mxu0
  %224 = vdwg.mxu0
  %225 = vmatprep.subr.mxu0 %v30
  %226 = vmatpush1.xpose.msra.mxu0 %v29
  %227 = vmatprep.subr.mxu0 %v38
  %228 = vmatpush1.xpose.msra.mxu0 %v37
  %229 = vmatprep.subr.mxu0 %v46
  %230 = vmatpush1.xpose.msra.mxu0 %v45
  %231 = vmatprep.subr.mxu0 %v54
  %232 = vmatpush1.xpose.msra.mxu0 %v53
  %233 = vmatprep.subr.mxu0 %v62
  %234 = vmatpush1.xpose.msra.mxu0 %v61
  %235 = vmatprep.subr.mxu0 %v70
  %236 = vmatpush1.xpose.msra.mxu0 %v69
  %237 = vmatprep.subr.mxu0 %v78
  %238 = vmatpush1.xpose.msra.mxu0 %v77
  %239 = vmatprep.subr.mxu0 %v86
  %240 = vmatpush1.xpose.msra.mxu0 %v85
  %241 = vmatprep.subr.mxu0 %v94
  %242 = vmatpush1.xpose.msra.mxu0 %v93
  %243 = vmatprep.subr.mxu0 %v102
  %244 = vmatpush1.xpose.msra.mxu0 %v101
  %245 = vmatprep.subr.mxu0 %v110
  %246 = vmatpush1.xpose.msra.mxu0 %v109
  %247 = vmatprep.subr.mxu0 %v118
  %248 = vmatpush1.xpose.msra.mxu0 %v117
  %249 = vmatprep.subr.mxu0 %v126
  %250 = vmatpush1.xpose.msra.mxu0 %v125
  %251 = vmatprep.subr.mxu0 %v134
  %252 = vmatpush1.xpose.msra.mxu0 %v133
  %253 = vmatprep.subr.mxu0 %v142
  %254 = vmatpush1.xpose.msra.mxu0 %v141
  %255 = vmatprep.subr.mxu0 %v150
  %256 = vmatpush1.xpose.msra.mxu0 %v149
  %257 = vmatprep.subr.mxu0 0.0
  %258 = vmatpush1.xpose.msra.mxu0 0.0
  %259 = vmatprep.subr.mxu0 0.0
  %260 = vmatpush1.xpose.msra.mxu0 0.0
  %261 = vmatprep.subr.mxu0 0.0
  %262 = vmatpush1.xpose.msra.mxu0 0.0
  %263 = vmatprep.subr.mxu0 0.0
  %264 = vmatpush1.xpose.msra.mxu0 0.0
  %265 = vmatprep.subr.mxu0 0.0
  %266 = vmatpush1.xpose.msra.mxu0 0.0
  %267 = vmatprep.subr.mxu0 0.0
  %268 = vmatpush1.xpose.msra.mxu0 0.0
  %269 = vmatprep.subr.mxu0 0.0
  %270 = vmatpush1.xpose.msra.mxu0 0.0
  %271 = vmatprep.subr.mxu0 0.0
  %272 = vmatpush1.xpose.msra.mxu0 0.0
  %273 = vmatprep.subr.mxu0 0.0
  %274 = vmatpush1.xpose.msra.mxu0 0.0
  %275 = vmatprep.subr.mxu0 0.0
  %276 = vmatpush1.xpose.msra.mxu0 0.0
  %277 = vmatprep.subr.mxu0 0.0
  %278 = vmatpush1.xpose.msra.mxu0 0.0
  %279 = vmatprep.subr.mxu0 0.0
  %280 = vmatpush1.xpose.msra.mxu0 0.0
  %281 = vmatprep.subr.mxu0 0.0
  %282 = vmatpush1.xpose.msra.mxu0 0.0
  %283 = vmatprep.subr.mxu0 0.0
  %284 = vmatpush1.xpose.msra.mxu0 0.0
  %285 = vmatprep.subr.mxu0 0.0
  %286 = vmatpush1.xpose.msra.mxu0 0.0
  %287 = vmatprep.subr.mxu0 0.0
  %288 = vmatpush1.xpose.msra.mxu0 0.0
  %289 = vmatprep.mubr.f32.mxu0 %v22
  %290 = vmatmul.mubr.f32.gmra.mrb[0].mxu0 %v21
  %v291 = vpop.f32.mrb[0].mxu0
  %v292 = vadd.f32 %v222, %v291
  %v293 = vpop.f32.mrb[0].mxu0
  %294 = vdwg.mxu0
  %295 = vmatprep.subr.mxu0 %v32
  %296 = vmatpush1.xpose.msra.mxu0 %v31
  %297 = vmatprep.subr.mxu0 %v40
  %298 = vmatpush1.xpose.msra.mxu0 %v39
  %299 = vmatprep.subr.mxu0 %v48
  %300 = vmatpush1.xpose.msra.mxu0 %v47
  %301 = vmatprep.subr.mxu0 %v56
  %302 = vmatpush1.xpose.msra.mxu0 %v55
  %303 = vmatprep.subr.mxu0 %v64
  %304 = vmatpush1.xpose.msra.mxu0 %v63
  %305 = vmatprep.subr.mxu0 %v72
  %306 = vmatpush1.xpose.msra.mxu0 %v71
  %307 = vmatprep.subr.mxu0 %v80
  %308 = vmatpush1.xpose.msra.mxu0 %v79
  %309 = vmatprep.subr.mxu0 %v88
  %310 = vmatpush1.xpose.msra.mxu0 %v87
  %311 = vmatprep.subr.mxu0 %v96
  %312 = vmatpush1.xpose.msra.mxu0 %v95
  %313 = vmatprep.subr.mxu0 %v104
  %314 = vmatpush1.xpose.msra.mxu0 %v103
  %315 = vmatprep.subr.mxu0 %v112
  %316 = vmatpush1.xpose.msra.mxu0 %v111
  %317 = vmatprep.subr.mxu0 %v120
  %318 = vmatpush1.xpose.msra.mxu0 %v119
  %319 = vmatprep.subr.mxu0 %v128
  %320 = vmatpush1.xpose.msra.mxu0 %v127
  %321 = vmatprep.subr.mxu0 %v136
  %322 = vmatpush1.xpose.msra.mxu0 %v135
  %323 = vmatprep.subr.mxu0 %v144
  %324 = vmatpush1.xpose.msra.mxu0 %v143
  %325 = vmatprep.subr.mxu0 %v152
  %326 = vmatpush1.xpose.msra.mxu0 %v151
  %327 = vmatprep.subr.mxu0 0.0
  %328 = vmatpush1.xpose.msra.mxu0 0.0
  %329 = vmatprep.subr.mxu0 0.0
  %330 = vmatpush1.xpose.msra.mxu0 0.0
  %331 = vmatprep.subr.mxu0 0.0
  %332 = vmatpush1.xpose.msra.mxu0 0.0
  %333 = vmatprep.subr.mxu0 0.0
  %334 = vmatpush1.xpose.msra.mxu0 0.0
  %335 = vmatprep.subr.mxu0 0.0
  %336 = vmatpush1.xpose.msra.mxu0 0.0
  %337 = vmatprep.subr.mxu0 0.0
  %338 = vmatpush1.xpose.msra.mxu0 0.0
  %339 = vmatprep.subr.mxu0 0.0
  %340 = vmatpush1.xpose.msra.mxu0 0.0
  %341 = vmatprep.subr.mxu0 0.0
  %342 = vmatpush1.xpose.msra.mxu0 0.0
  %343 = vmatprep.subr.mxu0 0.0
  %344 = vmatpush1.xpose.msra.mxu0 0.0
  %345 = vmatprep.subr.mxu0 0.0
  %346 = vmatpush1.xpose.msra.mxu0 0.0
  %347 = vmatprep.subr.mxu0 0.0
  %348 = vmatpush1.xpose.msra.mxu0 0.0
  %349 = vmatprep.subr.mxu0 0.0
  %350 = vmatpush1.xpose.msra.mxu0 0.0
  %351 = vmatprep.subr.mxu0 0.0
  %352 = vmatpush1.xpose.msra.mxu0 0.0
  %353 = vmatprep.subr.mxu0 0.0
  %354 = vmatpush1.xpose.msra.mxu0 0.0
  %355 = vmatprep.subr.mxu0 0.0
  %356 = vmatpush1.xpose.msra.mxu0 0.0
  %357 = vmatprep.subr.mxu0 0.0
  %358 = vmatpush1.xpose.msra.mxu0 0.0
  %359 = vmatprep.mubr.f32.mxu0 %v24
  %360 = vmatmul.mubr.f32.gmra.mrb[0].mxu0 %v23
  %v361 = vpop.f32.mrb[0].mxu0
  %v362 = vadd.f32 %v292, %v361
  %v363 = vpop.f32.mrb[0].mxu0
  %364 = vdwg.mxu0
  %365 = vmatprep.subr.mxu0 %v34
  %366 = vmatpush1.xpose.msra.mxu0 %v33
  %367 = vmatprep.subr.mxu0 %v42
  %368 = vmatpush1.xpose.msra.mxu0 %v41
  %369 = vmatprep.subr.mxu0 %v50
  %370 = vmatpush1.xpose.msra.mxu0 %v49
  %371 = vmatprep.subr.mxu0 %v58
  %372 = vmatpush1.xpose.msra.mxu0 %v57
  %373 = vmatprep.subr.mxu0 %v66
  %374 = vmatpush1.xpose.msra.mxu0 %v65
  %375 = vmatprep.subr.mxu0 %v74
  %376 = vmatpush1.xpose.msra.mxu0 %v73
  %377 = vmatprep.subr.mxu0 %v82
  %378 = vmatpush1.xpose.msra.mxu0 %v81
  %379 = vmatprep.subr.mxu0 %v90
  %380 = vmatpush1.xpose.msra.mxu0 %v89
  %381 = vmatprep.subr.mxu0 %v98
  %382 = vmatpush1.xpose.msra.mxu0 %v97
  %383 = vmatprep.subr.mxu0 %v106
  %384 = vmatpush1.xpose.msra.mxu0 %v105
  %385 = vmatprep.subr.mxu0 %v114
  %386 = vmatpush1.xpose.msra.mxu0 %v113
  %387 = vmatprep.subr.mxu0 %v122
  %388 = vmatpush1.xpose.msra.mxu0 %v121
  %389 = vmatprep.subr.mxu0 %v130
  %390 = vmatpush1.xpose.msra.mxu0 %v129
  %391 = vmatprep.subr.mxu0 %v138
  %392 = vmatpush1.xpose.msra.mxu0 %v137
  %393 = vmatprep.subr.mxu0 %v146
  %394 = vmatpush1.xpose.msra.mxu0 %v145
  %395 = vmatprep.subr.mxu0 %v154
  %396 = vmatpush1.xpose.msra.mxu0 %v153
  %397 = vmatprep.subr.mxu0 0.0
  %398 = vmatpush1.xpose.msra.mxu0 0.0
  %399 = vmatprep.subr.mxu0 0.0
  %400 = vmatpush1.xpose.msra.mxu0 0.0
  %401 = vmatprep.subr.mxu0 0.0
  %402 = vmatpush1.xpose.msra.mxu0 0.0
  %403 = vmatprep.subr.mxu0 0.0
  %404 = vmatpush1.xpose.msra.mxu0 0.0
  %405 = vmatprep.subr.mxu0 0.0
  %406 = vmatpush1.xpose.msra.mxu0 0.0
  %407 = vmatprep.subr.mxu0 0.0
  %408 = vmatpush1.xpose.msra.mxu0 0.0
  %409 = vmatprep.subr.mxu0 0.0
  %410 = vmatpush1.xpose.msra.mxu0 0.0
  %411 = vmatprep.subr.mxu0 0.0
  %412 = vmatpush1.xpose.msra.mxu0 0.0
  %413 = vmatprep.subr.mxu0 0.0
  %414 = vmatpush1.xpose.msra.mxu0 0.0
  %415 = vmatprep.subr.mxu0 0.0
  %416 = vmatpush1.xpose.msra.mxu0 0.0
  %417 = vmatprep.subr.mxu0 0.0
  %418 = vmatpush1.xpose.msra.mxu0 0.0
  %419 = vmatprep.subr.mxu0 0.0
  %420 = vmatpush1.xpose.msra.mxu0 0.0
  %421 = vmatprep.subr.mxu0 0.0
  %422 = vmatpush1.xpose.msra.mxu0 0.0
  %423 = vmatprep.subr.mxu0 0.0
  %424 = vmatpush1.xpose.msra.mxu0 0.0
  %425 = vmatprep.subr.mxu0 0.0
  %426 = vmatpush1.xpose.msra.mxu0 0.0
  %427 = vmatprep.subr.mxu0 0.0
  %428 = vmatpush1.xpose.msra.mxu0 0.0
  %429 = vmatprep.mubr.f32.mxu0 %v26
  %430 = vmatmul.mubr.f32.gmra.mrb[0].mxu0 %v25
  %v431 = vpop.f32.mrb[0].mxu0
  %v432 = vadd.f32 %v362, %v431
  %v433 = vpop.f32.mrb[0].mxu0
  %434 = vdwg.mxu0
  %p435 = scmp.eq.s32.totalorder 0, 0
  // Predicated region
  $region10: #{head_forward.1} parent=0 // pred_check
    %p436 = pneg %p435
  $region11: #{head_forward.1} parent=0 // pred_check_branch
    %438 = sbr.rel (%p436) target = $region13
  $region12: #{head_forward.1} parent=0 // pred_region
    %439 = vst [vmem:[%s2] sm:$0xff] %v432
  $region13: #{head_forward.1} parent=0 // pred_fallthru
    _
  %p440 = scmp.gt.s32.totalorder 0, 0
  // Predicated region
  $region14: #{head_forward.1} parent=0 // pred_check
    %p441 = pneg %p440
  $region15: #{head_forward.1} parent=0 // pred_check_branch
    %443 = sbr.rel (%p441) target = $region17
  $region16: #{head_forward.1} parent=0 // pred_region
    %v444 = vld [vmem:[%s2] sm:$0xff]
    %v445 = vadd.f32 %v444, %v432
    %446 = vst [vmem:[%s2] sm:$0xff] %v445
  $region17: #{head_forward.1} parent=0 // pred_fallthru
    _
  // Predicated region
  $region18: #{head_forward.1} parent=0 // pred_check
    _
  $region19: #{head_forward.1} parent=0 // pred_check_branch
    %448 = sbr.rel (0) target = $region21
  $region20: #{head_forward.1} parent=0 // pred_region
    _
  $region21: #{head_forward.1} parent=0 // pred_fallthru
    _
  // Predicated region
  $region22: #{head_forward.1} parent=0 // pred_check
    _
  $region23: #{head_forward.1} parent=0 // pred_check_branch
    %450 = sbr.rel (0) target = $region25
  $region24: #{head_forward.1} parent=0 // pred_region
    _
  $region25: #{head_forward.1} parent=0 // pred_fallthru
    _

</llo_original>
